<compile_context>
chip_gen: v6e
topology: v6e:2x2x1
jax: 0.10.0
libtpu: 0.0.40
codegen_flags: <defaults>
</compile_context>

<pallas_src>
import functools

import jax
import jax.numpy as jnp
import numpy as np
from jax.experimental import pallas as pl
from jax.experimental.pallas import tpu as pltpu


def rope_kernel(cos_ref, sin_e_ref, sin_o_ref, x_ref, o_ref, *, valid_w):
    """One (TM, WB) tile: out = x*cos_signed + x[j+1]*sin_even + x[j-1]*sin_odd."""
    compute_dtype = cos_ref.dtype                     # f32, or bf16 on v7x/bf16 inputs
    x = x_ref[...].astype(compute_dtype)              # (TM, WB)
    wb = x.shape[-1]
    if valid_w is not None:
        # Padded last lane block (only for awkward S*D): zero the pad lanes so
        # stale-VMEM garbage can never leak through the rolls (0 * NaN guard).
        lane = jax.lax.broadcasted_iota(jnp.int32, x.shape, 1) + pl.program_id(0) * wb
        x = jnp.where(lane < valid_w, x, jnp.zeros_like(x))
    # Pair partners via XLU rolls (non-negative shifts only):
    #   x_next[j] = x[j+1]   (roll by WB-1 == cyclic roll by -1)
    #   x_prev[j] = x[j-1]
    # Wraparound lanes (j == WB-1 for x_next, j == 0 for x_prev) are multiplied
    # by the explicit zeros in the masked sin tables, so they never leak.
    x_next = pltpu.roll(x, shift=wb - 1, axis=1)
    x_prev = pltpu.roll(x, shift=1, axis=1)
    out = x * cos_ref[...] + x_next * sin_e_ref[...] + x_prev * sin_o_ref[...]
    o_ref[...] = out.astype(o_ref.dtype)


def make_freqs(dim, base=10000.0):
    # Matches RoPE.create_freqs(dim // 2): 1 / base ** (arange(0, n, 2) / n)
    n = dim // 2
    return (1.0 / base ** (jnp.arange(0, n, 2, dtype=jnp.float32) / n)).astype(jnp.float32)


def _build_tables(freqs, seq_len, feat_dim, traditional, offset, table_dtype):
    """Hoisted (1, S*D) tables: sign-folded cos and lane-masked sin."""
    t = jnp.arange(seq_len, dtype=jnp.float32)
    if traditional:                       # non-traditional path ignores offset, like the module
        t = t + jnp.float32(offset)
    theta = t[:, None] * freqs[None, :].astype(jnp.float32)   # (S, F), F = D // 2
    cos = jnp.cos(theta)
    sin = jnp.sin(theta)
    zero = jnp.zeros_like(sin)

    def interleave(even, odd):            # (S, F) x 2 -> (S, D) with even/odd lanes
        return jnp.stack([even, odd], axis=-1).reshape(seq_len, feat_dim)

    w = seq_len * feat_dim
    cos_signed = interleave(cos, -cos).reshape(1, w).astype(table_dtype)
    sin_even = interleave(sin, zero).reshape(1, w).astype(table_dtype)
    sin_odd = interleave(zero, sin).reshape(1, w).astype(table_dtype)
    return cos_signed, sin_even, sin_odd


def _tpu_memory_profile():
    """Returns (vmem_capacity_bytes, is_v7_or_newer) with safe fallbacks."""
    kind = ""
    try:
        kind = jax.devices()[0].device_kind.lower()
    except Exception:
        pass
    is_v7 = "v7" in kind
    try:
        cap = int(pltpu.get_tpu_info().vmem_capacity_bytes)
    except Exception:
        cap = (64 << 20) if is_v7 else (128 << 20)
    return cap, is_v7


def _choose_lane_block(w, lane_cap=8192):
    """Full width if modest; else the largest 128-multiple divisor <= lane_cap.

    If no divisor exists (awkward S*D), fall back to a padded last lane block of
    width lane_cap (the kernel's lane mask keeps that path exact), so an odd
    shape never forces an oversized full-width block.
    """
    if w <= lane_cap:
        return w
    best = (lane_cap // 128) * 128
    cand = best
    while cand >= 128:
        if w % cand == 0:
            return cand
        cand -= 128
    return best


def _choose_row_block(n_rows, wb, itemsize, vmem_limit_bytes,
                      per_buffer_cap_bytes=8 << 20):
    """Row-block (sublane) size sized off the scoped VMEM limit.

    Double-buffered x input + output = 4 (tm, wb) tiles; keep them within about
    half the scoped VMEM limit (the rest covers the resident tables, in-register
    f32 temporaries and compiler scratch), cap the per-buffer tile at ~8 MiB,
    and keep >= 2 steps on the row (parallel) axis so both v7x TCs get a shard.
    """
    if n_rows <= 8:
        return n_rows                                   # full first dim: always legal
    row_bytes = wb * itemsize
    tm = (vmem_limit_bytes // 2) // (4 * row_bytes)
    tm = min(tm, per_buffer_cap_bytes // row_bytes)
    tm = max(8, (tm // 8) * 8)
    if n_rows >= 16:
        tm = min(tm, max(8, (n_rows // 2) // 8 * 8))
    return min(tm, n_rows)


def rope_pallas(x, freqs, traditional=False, offset=0):
    """Forward pass of the RoPE module for x of shape [B, H, S, D]."""
    B, H, S, D = x.shape
    F = freqs.shape[0]
    assert D == 2 * F, "feature dim must equal 2 * len(freqs) (reference broadcast rule)"
    assert D % 2 == 0

    n_rows, w = B * H, S * D
    x_flat = x.reshape(n_rows, w)                       # free reshape; pairs stay adjacent

    vmem_cap, is_v7 = _tpu_memory_profile()
    # ~48 MiB scoped on v7x (64 MiB physical/TC), ~96 MiB on v5e/v6e (128 MiB).
    vmem_limit = max(32 << 20, min(int(vmem_cap * 3 // 4), 96 << 20))

    # bf16 math only where the VPU is bf16-capable and the kernel is VALU-bound
    # (v7x with bf16 activations); keep f32 tables/math everywhere else.
    table_dtype = jnp.bfloat16 if (is_v7 and x.dtype == jnp.bfloat16) else jnp.float32
    cos_t, sin_e, sin_o = _build_tables(freqs, S, D, traditional, offset, table_dtype)

    wb = _choose_lane_block(w)
    tm = _choose_row_block(n_rows, wb, x.dtype.itemsize, vmem_limit)
    valid_w = w if (w % wb != 0) else None              # padded last lane block?

    # Rows are the inner (fastest) grid axis; table block index depends only on
    # the lane axis, so their DMA is elided across the whole inner row sweep.
    grid = (pl.cdiv(w, wb), pl.cdiv(n_rows, tm))
    tab_spec = pl.BlockSpec((1, wb), lambda j, i: (0, j))       # loop-invariant tables
    x_spec = pl.BlockSpec((tm, wb), lambda j, i: (i, j))

    cost = pl.CostEstimate(
        flops=5 * n_rows * w,
        transcendentals=0,
        bytes_accessed=2 * n_rows * w * x.dtype.itemsize
        + 3 * w * jnp.dtype(table_dtype).itemsize,
    )

    out = pl.pallas_call(
        functools.partial(rope_kernel, valid_w=valid_w),
        out_shape=jax.ShapeDtypeStruct((n_rows, w), x.dtype),   # native dtype end-to-end
        grid=grid,
        in_specs=[tab_spec, tab_spec, tab_spec, x_spec],
        out_specs=x_spec,
        input_output_aliases={3: 0},                            # donate x (in-place RoPE)
        cost_estimate=cost,
        compiler_params=pltpu.CompilerParams(
            dimension_semantics=("parallel", "parallel"),
            vmem_limit_bytes=vmem_limit,
        ),
    )(cos_t, sin_e, sin_o, x_flat)
    return out.reshape(B, H, S, D)


def rope_ref(x, freqs, traditional=False, offset=0):
    # Pure-JAX transcription of the PyTorch forward (f32 reference).
    S = x.shape[2]
    t = jnp.arange(S, dtype=jnp.float32)
    if traditional:
        t = t + offset
    theta = t[:, None] * freqs[None, :].astype(jnp.float32)
    t_sin = jnp.sin(theta)
    t_cos = jnp.cos(theta)
    xf = x.astype(jnp.float32)
    xe = xf[..., 0::2]
    xo = xf[..., 1::2]
    out = jnp.stack([xe * t_cos + xo * t_sin, xe * t_sin - xo * t_cos], axis=-1)
    return out.reshape(x.shape)


if __name__ == "__main__":
    dim = 32                       # module param; F = len(arange(0, 16, 2)) = 8
    base = 10000.0
    freqs = make_freqs(dim, base)  # (8,), deterministic "parameter"
    D = 2 * int(freqs.shape[0])    # = 16, required by the reference broadcast

    key = jax.random.PRNGKey(0)
    k1, k2 = jax.random.split(key)

    # Test 1: f32, small spec-consistent shape [B, H, S, D] = [2, 4, 16, 16].
    B, H, S = 2, 4, 16
    x32 = jax.random.normal(k1, (B, H, S, D), dtype=jnp.float32)
    ref32 = rope_ref(x32, freqs)                      # compute ref first: x may be donated
    out32 = jax.block_until_ready(rope_pallas(x32, freqs))
    np.testing.assert_allclose(np.asarray(out32), np.asarray(ref32), rtol=1e-5, atol=1e-5)

    # Test 2: bf16 kept end-to-end (native dtype through HBM), multi-step row
    # grid (exercises the table-resident inner sweep), traditional=True, offset.
    B2, H2, S2 = 2, 16, 64
    xb = jax.random.normal(k2, (B2, H2, S2, D), dtype=jnp.bfloat16)
    refb = rope_ref(xb, freqs, traditional=True, offset=3)
    outb = jax.block_until_ready(rope_pallas(xb, freqs, traditional=True, offset=3))
    np.testing.assert_allclose(
        np.asarray(outb.astype(jnp.float32)), np.asarray(refb), rtol=3e-2, atol=3e-2
    )

    print("KERNEL_OK")
</pallas_src>

<mosaic_0001>
module attributes {stable_mosaic.version = 11 : i64} {
  func.func @rope_kernel(%arg0: i32, %arg1: i32, %arg2: memref<1x256xf32, #tpu.memory_space<vmem>>, %arg3: memref<1x256xf32, #tpu.memory_space<vmem>>, %arg4: memref<1x256xf32, #tpu.memory_space<vmem>>, %arg5: memref<8x256xf32, #tpu.memory_space<vmem>>, %arg6: memref<8x256xf32, #tpu.memory_space<vmem>>) attributes {dimension_semantics = [#tpu.dimension_semantics<parallel>, #tpu.dimension_semantics<parallel>], iteration_bounds = array<i64: 1, 1>, scalar_prefetch = 0 : i64, scratch_operands = 0 : i64, tpu.core_type = #tpu.core_type<tc>, window_params = [{transform_indices = @transform_0, window_bounds = array<i64: 1, 256>}, {transform_indices = @transform_1, window_bounds = array<i64: 1, 256>}, {transform_indices = @transform_2, window_bounds = array<i64: 1, 256>}, {transform_indices = @transform_3, window_bounds = array<i64: 8, 256>}, {transform_indices = @transform_4, window_bounds = array<i64: 8, 256>}]} {
    %c0 = arith.constant 0 : index
    %c0_0 = arith.constant 0 : index
    %0 = vector.load %arg5[%c0, %c0_0] : memref<8x256xf32, #tpu.memory_space<vmem>>, vector<8x256xf32>
    %c255_i32 = arith.constant 255 : i32
    %1 = tpu.dynamic_rotate %0 by %c255_i32 dim 1 : vector<8x256xf32>, i32 -> vector<8x256xf32>
    %c1_i32 = arith.constant 1 : i32
    %2 = tpu.dynamic_rotate %0 by %c1_i32 dim 1 : vector<8x256xf32>, i32 -> vector<8x256xf32>
    %c0_1 = arith.constant 0 : index
    %c0_2 = arith.constant 0 : index
    %3 = vector.load %arg2[%c0_1, %c0_2] : memref<1x256xf32, #tpu.memory_space<vmem>>, vector<1x256xf32>
    %4 = vector.broadcast %3 : vector<1x256xf32> to vector<8x256xf32>
    %5 = arith.mulf %0, %4 : vector<8x256xf32>
    %c0_3 = arith.constant 0 : index
    %c0_4 = arith.constant 0 : index
    %6 = vector.load %arg3[%c0_3, %c0_4] : memref<1x256xf32, #tpu.memory_space<vmem>>, vector<1x256xf32>
    %7 = vector.broadcast %6 : vector<1x256xf32> to vector<8x256xf32>
    %8 = arith.mulf %1, %7 : vector<8x256xf32>
    %9 = arith.addf %5, %8 : vector<8x256xf32>
    %c0_5 = arith.constant 0 : index
    %c0_6 = arith.constant 0 : index
    %10 = vector.load %arg4[%c0_5, %c0_6] : memref<1x256xf32, #tpu.memory_space<vmem>>, vector<1x256xf32>
    %11 = vector.broadcast %10 : vector<1x256xf32> to vector<8x256xf32>
    %12 = arith.mulf %2, %11 : vector<8x256xf32>
    %13 = arith.addf %9, %12 : vector<8x256xf32>
    %c0_7 = arith.constant 0 : index
    %c0_8 = arith.constant 0 : index
    %14 = vector.load %arg6[%c0_7, %c0_8] : memref<8x256xf32, #tpu.memory_space<vmem>>, vector<8x256xf32>
    tpu.vector_store %arg6[%c0_7, %c0_8], %13 {strides = array<i32>} : memref<8x256xf32, #tpu.memory_space<vmem>>, vector<8x256xf32>,
    return
  }
  func.func @transform_0(%arg0: i32, %arg1: i32) -> (i32, i32) {
    %c0_i32 = arith.constant 0 : i32
    %c0_i32_0 = arith.constant 0 : i32
    return %c0_i32, %arg0 : i32, i32
  }
  func.func @transform_1(%arg0: i32, %arg1: i32) -> (i32, i32) {
    %c0_i32 = arith.constant 0 : i32
    %c0_i32_0 = arith.constant 0 : i32
    return %c0_i32, %arg0 : i32, i32
  }
  func.func @transform_2(%arg0: i32, %arg1: i32) -> (i32, i32) {
    %c0_i32 = arith.constant 0 : i32
    %c0_i32_0 = arith.constant 0 : i32
    return %c0_i32, %arg0 : i32, i32
  }
  func.func @transform_3(%arg0: i32, %arg1: i32) -> (i32, i32) {
    %c0_i32 = arith.constant 0 : i32
    return %arg1, %arg0 : i32, i32
  }
  func.func @transform_4(%arg0: i32, %arg1: i32) -> (i32, i32) {
    %c0_i32 = arith.constant 0 : i32
    return %arg1, %arg0 : i32, i32
  }
}

</mosaic_0001>

<llo_original>
// kernel: tpu_custom_call.1
$region0: #{tpu_custom_call.1}
  #allocation0 [shape = 'u32[]', space=smem, size = 0x4, offset = 0x4, fixed_abs, tag = 'smem constant byte address 0x4 - core index']
  #allocation1 [shape = 'u32[144,128]{1,0:T(1,128)}', space=vmem, size = 0x12000, scoped, tag = 'internal scratch']
  %s0 = inlined_call_operand.vmem [shape: f32[1,256], index: 0, kind: input, shape index: {}]
  %s1 = inlined_call_operand.vmem [shape: f32[1,256], index: 1, kind: input, shape index: {}]
  %s2 = inlined_call_operand.vmem [shape: f32[1,256], index: 2, kind: input, shape index: {}]
  %s3 = inlined_call_operand.hbm [shape: f32[8,256], index: 3, kind: input, shape index: {}, may-alias: {3,4}]
  %s4 = inlined_call_operand.hbm [shape: f32[8,256], index: 4, kind: output, shape index: {}, may-alias: {3,4}]
  %s5 = sld [smem:[#allocation0]]
  $region30: #{tpu_custom_call.1} parent=0
    _
  %s7 = ssub.s32 1, %s5
  %s8 = scalar_select 0, %s7, %s5
  $region1: #{tpu_custom_call.1} parent=0
    #allocation2 [shape = 'u8[8192]{0}', space=vmem, size = 0x2000, scoped, tag = 'input window, operand 3, single buffered']
    #allocation3 [shape = 's32[1]{0}', space=sflag, size = 0x4, scoped, tag = 'scoped memory for tpu_custom_call.1']
    #allocation4 [shape = 's32[1]{0}', space=sflag, size = 0x4, scoped, tag = 'scoped memory for tpu_custom_call.1']
    #allocation5 [shape = 'u8[8192]{0}', space=vmem, size = 0x2000, scoped, tag = 'output window, operand 0, single buffered']
    %9 = vsyncpa [#allocation3], 0
    %10 = vsyncpa [#allocation4], 0
    // Predicated region
    $region2: #{tpu_custom_call.1} parent=1 // pred_check
      _
    $region3: #{tpu_custom_call.1} parent=1 // pred_check_branch
      %12 = sbr.rel (0) target = $region5
    $region4: #{tpu_custom_call.1} parent=1 // pred_region
      _
    $region5: #{tpu_custom_call.1} parent=1 // pred_fallthru
      _
    // Predicated region
    $region6: #{tpu_custom_call.1} parent=1 // pred_check
      _
    $region7: #{tpu_custom_call.1} parent=1 // pred_check_branch
      %14 = sbr.rel (0) target = $region9
    $region8: #{tpu_custom_call.1} parent=1 // pred_region
      _
    $region9: #{tpu_custom_call.1} parent=1 // pred_fallthru
      _
    // Predicated region
    $region10: #{tpu_custom_call.1} parent=1 // pred_check
      _
    $region11: #{tpu_custom_call.1} parent=1 // pred_check_branch
      %16 = sbr.rel (0) target = $region13
    $region12: #{tpu_custom_call.1} parent=1 // pred_region
      _
    $region13: #{tpu_custom_call.1} parent=1 // pred_fallthru
      _
    // Predicated region
    $region14: #{tpu_custom_call.1} parent=1 // pred_check
      _
    $region15: #{tpu_custom_call.1} parent=1 // pred_check_branch
      %18 = sbr.rel (0) target = $region17
    $region16: #{tpu_custom_call.1} parent=1 // pred_region
      %s20 = ssub.s32 256, 256
      %21 = vsyncadd [#allocation3], %s20
      %s23 = sshll.u32 [#allocation2], 4
      %s24 = int_to_ptr.vmem [resolvable:$true] %s23
      %26 = dma.hbm_to_vmem [thread:$0]  %s3, 256, %s24, [#allocation3]
    $region17: #{tpu_custom_call.1} parent=1 // pred_fallthru
      _
    // Predicated region
    $region18: #{tpu_custom_call.1} parent=1 // pred_check
      _
    $region19: #{tpu_custom_call.1} parent=1 // pred_check_branch
      %28 = sbr.rel (0) target = $region21
    $region20: #{tpu_custom_call.1} parent=1 // pred_region
      %29 = dma.done [#allocation3], 256
    $region21: #{tpu_custom_call.1} parent=1 // pred_fallthru
      _
    %v30 = vld [vmem:[#allocation2] sm:$0xff]
    %v31 = vld [vmem:[#allocation2 + $0x8] sm:$0xff]
    %32 = vrot.lane.b32.xlu0 %v30, 127
    %v33 = vpop.permute.xlu0 %32
    %34 = vrot.lane.b32.xlu0 %v31, 127
    %v35 = vpop.permute.xlu0 %34
    %v36 = vlaneseq
    %v37 = vand.u32 %v36, 127
    %vm38 = vcmp.lt.s32.totalorder %v37, 127
    %v39 = vsel %vm38, %v33, %v35
    %v40 = vsel %vm38, %v35, %v33
    %41 = vrot.lane.b32.xlu0 %v30, 1
    %v42 = vpop.permute.xlu0 %41
    %43 = vrot.lane.b32.xlu0 %v31, 1
    %v44 = vpop.permute.xlu0 %43
    %vm45 = vcmp.lt.s32.totalorder %v37, 1
    %v46 = vsel %vm45, %v42, %v44
    %v47 = vsel %vm45, %v44, %v42
    %v48 = vld [vmem:[%s0] sm:$0x3]
    %v50 = vlaneseq
    %v51 = vshrl.u32 %v50, 7
    %v52 = vsub.s32 0, %v51
    %v53 = vrot.slane %v48, %v52
    %v54 = vlaneseq
    %v55 = vshrl.u32 %v54, 7
    %v56 = vsub.s32 1, %v55
    %v57 = vrot.slane %v48, %v56
    %v60 = vmul.f32 %v30, %v53
    %v61 = vmul.f32 %v31, %v57
    %v62 = vld [vmem:[%s1] sm:$0x3]
    %v64 = vlaneseq
    %v65 = vshrl.u32 %v64, 7
    %v66 = vsub.s32 0, %v65
    %v67 = vrot.slane %v62, %v66
    %v68 = vlaneseq
    %v69 = vshrl.u32 %v68, 7
    %v70 = vsub.s32 1, %v69
    %v71 = vrot.slane %v62, %v70
    %v74 = vmul.f32 %v39, %v67
    %v75 = vmul.f32 %v40, %v71
    %v76 = vadd.f32 %v60, %v74
    %v77 = vadd.f32 %v61, %v75
    %v78 = vld [vmem:[%s2] sm:$0x3]
    %v80 = vlaneseq
    %v81 = vshrl.u32 %v80, 7
    %v82 = vsub.s32 0, %v81
    %v83 = vrot.slane %v78, %v82
    %v84 = vlaneseq
    %v85 = vshrl.u32 %v84, 7
    %v86 = vsub.s32 1, %v85
    %v87 = vrot.slane %v78, %v86
    %v90 = vmul.f32 %v47, %v83
    %v91 = vmul.f32 %v46, %v87
    %v92 = vadd.f32 %v76, %v90
    %v93 = vadd.f32 %v77, %v91
    %94 = vst [vmem:[#allocation5] sm:$0xff] %v92
    %95 = vst [vmem:[#allocation5 + $0x8] sm:$0xff] %v93
    // Predicated region
    $region22: #{tpu_custom_call.1} parent=1 // pred_check
      _
    $region23: #{tpu_custom_call.1} parent=1 // pred_check_branch
      %97 = sbr.rel (0) target = $region25
    $region24: #{tpu_custom_call.1} parent=1 // pred_region
      %s99 = ssub.s32 256, 256
      %100 = vsyncadd [#allocation4], %s99
      %s102 = sshll.u32 [#allocation5], 4
      %s103 = int_to_ptr.vmem [resolvable:$true] %s102
      %105 = dma.vmem_to_hbm [thread:$0]  %s103, 256, %s4, [#allocation4]
    $region25: #{tpu_custom_call.1} parent=1 // pred_fallthru
      _
    // Predicated region
    $region26: #{tpu_custom_call.1} parent=1 // pred_check
      _
    $region27: #{tpu_custom_call.1} parent=1 // pred_check_branch
      %107 = sbr.rel (0) target = $region29
    $region28: #{tpu_custom_call.1} parent=1 // pred_region
      %108 = dma.done [#allocation4], 256
    $region29: #{tpu_custom_call.1} parent=1 // pred_fallthru
      _
    %109 = vsyncpa [#allocation3], 1
    %110 = vsyncpa [#allocation4], 1

</llo_original>
